<compile_context>
chip_gen: v5e
topology: v5e:2x2
jax: 0.10.0
libtpu: 0.0.40
codegen_flags: <defaults>
</compile_context>

<pallas_src>
import jax
import jax.numpy as jnp
from jax.experimental import pallas as pl
from jax.experimental.pallas import tpu as pltpu

LANE = 128
SUBLANE = 8


def _round_up(x, m):
    return (x + m - 1) // m * m


# --------------------------------------------------------------------------
# Kernel
# --------------------------------------------------------------------------
def linear_block_kernel(x_ref, w_ref, bias_ref, o_ref):
    # x_ref: (block_m, Cin), w_ref: (Cin, Cout_p), bias_ref: (1, Cout_p),
    # o_ref: (block_m, Cout_p).  BN scale already folded into w; bias holds
    # beta + (b - mean) * scale.
    y = jnp.dot(x_ref[...], w_ref[...], preferred_element_type=jnp.float32)
    y = y + bias_ref[...]
    o_ref[...] = jnp.maximum(y, 0.0).astype(o_ref.dtype)


# --------------------------------------------------------------------------
# Parameter folding (Linear bias + BatchNorm1d eval-mode stats)
# --------------------------------------------------------------------------
def fold_linear_bn_params(w, b, gamma, beta, mean, var, eps=1e-5):
    """Fold BN (eval mode) into the linear weight/bias.

    Returns (w_folded (Cin, Cout), bias_folded (Cout,)) such that
      relu(x @ w_folded + bias_folded) == relu(((x @ w + b) - mean) * g/sqrt(v+eps) + beta)
    """
    scale = gamma * jax.lax.rsqrt(var + eps)
    w_folded = w * scale[None, :]
    bias_folded = (b - mean) * scale + beta
    return w_folded, bias_folded


# --------------------------------------------------------------------------
# Wrapper
# --------------------------------------------------------------------------
def _pick_block_m(cin, cout_p, x_itemsize,
                  budget_bytes=12 * 1024 * 1024, max_bm=1024):
    """Largest row-tile whose double-buffered working set fits the VMEM budget."""
    w_bytes = cin * cout_p * x_itemsize
    per_row = 2 * (cin * x_itemsize + cout_p * 4)   # 2x-buffered x tile + f32 out tile
    bm = (budget_bytes - w_bytes) // max(per_row, 1)
    if bm >= LANE:
        bm = (bm // LANE) * LANE
    else:
        bm = SUBLANE
    return int(max(SUBLANE, min(max_bm, bm)))


def linear_block_pallas(x, w_folded, bias_folded, *, block_m=None,
                        compute_dtype=None):
    """Linear + BatchNorm1d (eval, pre-folded) + ReLU.

    x: (M, Cin) float32; w_folded: (Cin, Cout); bias_folded: (Cout,).
    compute_dtype: optional (e.g. jnp.bfloat16) for x/w to halve HBM traffic;
    MXU accumulation and epilogue stay float32.
    """
    M, Cin = x.shape
    Cout = w_folded.shape[1]

    if compute_dtype is not None:
        x = x.astype(compute_dtype)
        w_folded = w_folded.astype(compute_dtype)

    # Lane-dense output: pad Cout up to a multiple of 128 (zero weight/bias
    # columns -> padded outputs are relu(0) = 0, sliced off below).
    Cout_p = _round_up(Cout, LANE)
    if Cout_p != Cout:
        w_folded = jnp.pad(w_folded, ((0, 0), (0, Cout_p - Cout)))
        bias_folded = jnp.pad(bias_folded, (0, Cout_p - Cout))
    bias2d = bias_folded.reshape(1, Cout_p).astype(jnp.float32)

    if block_m is None:
        block_m = _pick_block_m(Cin, Cout_p, jnp.dtype(x.dtype).itemsize)
    # Don't exceed (rounded-up) M; keep a sublane multiple.
    block_m = _round_up(min(block_m, _round_up(M, SUBLANE)), SUBLANE)
    block_m = max(SUBLANE, block_m)

    grid = (pl.cdiv(M, block_m),)   # ragged tail handled by Pallas edge masking

    out = pl.pallas_call(
        linear_block_kernel,
        out_shape=jax.ShapeDtypeStruct((M, Cout_p), jnp.float32),
        grid=grid,
        in_specs=[
            pl.BlockSpec((block_m, Cin), lambda i: (i, 0)),   # streamed
            pl.BlockSpec((Cin, Cout_p), lambda i: (0, 0)),    # VMEM-resident
            pl.BlockSpec((1, Cout_p), lambda i: (0, 0)),      # VMEM-resident
        ],
        out_specs=pl.BlockSpec((block_m, Cout_p), lambda i: (i, 0)),
        compiler_params=pltpu.CompilerParams(
            dimension_semantics=("parallel",)),
    )(x, w_folded, bias2d)

    return out[:, :Cout] if Cout_p != Cout else out


# --------------------------------------------------------------------------
if __name__ == "__main__":
    key = jax.random.PRNGKey(0)
    kx, kw, kb, kg, kbe, km, kv = jax.random.split(key, 7)

    # Small shapes consistent with the module: 300 rows (non-multiple of the
    # tile to exercise the masked tail), in_ch=32, out_ch=48 (exercises the
    # Cout -> 128 lane padding).
    M, in_ch, out_ch = 300, 32, 48

    x = jax.random.normal(kx, (M, in_ch), jnp.float32)

    # Linear + BatchNorm1d (eval-mode running stats) parameters.
    w = jax.random.normal(kw, (in_ch, out_ch), jnp.float32) * 0.1
    b = jax.random.normal(kb, (out_ch,), jnp.float32) * 0.1
    gamma = 1.0 + 0.1 * jax.random.normal(kg, (out_ch,), jnp.float32)
    beta = 0.1 * jax.random.normal(kbe, (out_ch,), jnp.float32)
    mean = 0.1 * jax.random.normal(km, (out_ch,), jnp.float32)
    var = jnp.abs(jax.random.normal(kv, (out_ch,), jnp.float32)) + 1.0

    w_f, b_f = fold_linear_bn_params(w, b, gamma, beta, mean, var)

    # Reference eval-mode forward (unfolded, f32).
    scale = gamma / jnp.sqrt(var + 1e-5)
    ref = jnp.maximum((x @ w + b - mean) * scale + beta, 0.0)

    # 1) f32 path with a small tile so the grid really has several steps.
    out_f32 = linear_block_pallas(x, w_f, b_f, block_m=128)
    jax.block_until_ready(out_f32)
    assert out_f32.shape == (M, out_ch)
    err = float(jnp.max(jnp.abs(out_f32 - ref)))
    assert err < 1e-4, f"f32 max err {err}"

    # 2) bf16 inputs/weights (halves HBM traffic at real sizes), f32 accumulate.
    out_bf16 = linear_block_pallas(x, w_f, b_f, block_m=128,
                                   compute_dtype=jnp.bfloat16)
    jax.block_until_ready(out_bf16)
    err_bf = float(jnp.max(jnp.abs(out_bf16 - ref)))
    assert err_bf < 5e-2, f"bf16 max err {err_bf}"

    # 3) Auto-sized (VMEM-budgeted) tile — the configuration used at real sizes.
    out_auto = linear_block_pallas(x, w_f, b_f)
    jax.block_until_ready(out_auto)
    assert float(jnp.max(jnp.abs(out_auto - ref))) < 1e-4

    print("KERNEL_OK")
</pallas_src>

<mosaic_0001>
module attributes {stable_mosaic.version = 11 : i64} {
  func.func @linear_block_kernel(%arg0: i32, %arg1: memref<128x32xf32, #tpu.memory_space<vmem>>, %arg2: memref<32x128xf32, #tpu.memory_space<vmem>>, %arg3: memref<1x128xf32, #tpu.memory_space<vmem>>, %arg4: memref<128x128xf32, #tpu.memory_space<vmem>>) attributes {dimension_semantics = [#tpu.dimension_semantics<parallel>], iteration_bounds = array<i64: 3>, scalar_prefetch = 0 : i64, scratch_operands = 0 : i64, tpu.core_type = #tpu.core_type<tc>, window_params = [{transform_indices = @transform_0, window_bounds = array<i64: 128, 32>}, {pipeline_mode = #tpu.pipeline_mode<synchronous>, transform_indices = @transform_1, window_bounds = array<i64: 32, 128>}, {pipeline_mode = #tpu.pipeline_mode<synchronous>, transform_indices = @transform_2, window_bounds = array<i64: 1, 128>}, {transform_indices = @transform_3, window_bounds = array<i64: 128, 128>}]} {
    %c0 = arith.constant 0 : index
    %c0_0 = arith.constant 0 : index
    %0 = vector.load %arg1[%c0, %c0_0] : memref<128x32xf32, #tpu.memory_space<vmem>>, vector<128x32xf32>
    %c0_1 = arith.constant 0 : index
    %c0_2 = arith.constant 0 : index
    %1 = vector.load %arg2[%c0_1, %c0_2] : memref<32x128xf32, #tpu.memory_space<vmem>>, vector<32x128xf32>
    %cst = arith.constant dense<0.000000e+00> : vector<128x128xf32>
    %2 = tpu.matmul %0, %1, %cst {dimension_numbers = #tpu.dot_dimension_numbers<[1], [0], [0], [1], [0, 0, 1, 1], [], []>} : vector<128x32xf32>, vector<32x128xf32>, vector<128x128xf32> -> vector<128x128xf32>
    %c0_3 = arith.constant 0 : index
    %c0_4 = arith.constant 0 : index
    %3 = vector.load %arg3[%c0_3, %c0_4] : memref<1x128xf32, #tpu.memory_space<vmem>>, vector<1x128xf32>
    %4 = vector.broadcast %3 : vector<1x128xf32> to vector<128x128xf32>
    %5 = arith.addf %2, %4 : vector<128x128xf32>
    %cst_5 = arith.constant 0.000000e+00 : f32
    %6 = vector.broadcast %cst_5 : f32 to vector<128x128xf32>
    %7 = arith.maximumf %5, %6 : vector<128x128xf32>
    %c0_6 = arith.constant 0 : index
    %c0_7 = arith.constant 0 : index
    %8 = vector.load %arg4[%c0_6, %c0_7] : memref<128x128xf32, #tpu.memory_space<vmem>>, vector<128x128xf32>
    tpu.vector_store %arg4[%c0_6, %c0_7], %7 {strides = array<i32>} : memref<128x128xf32, #tpu.memory_space<vmem>>, vector<128x128xf32>,
    return
  }
  func.func @transform_0(%arg0: i32) -> (i32, i32) {
    %c0_i32 = arith.constant 0 : i32
    %c0_i32_0 = arith.constant 0 : i32
    return %arg0, %c0_i32 : i32, i32
  }
  func.func @transform_1(%arg0: i32) -> (i32, i32) {
    %c0_i32 = arith.constant 0 : i32
    %c0_i32_0 = arith.constant 0 : i32
    %c0_i32_1 = arith.constant 0 : i32
    return %c0_i32, %c0_i32_0 : i32, i32
  }
  func.func @transform_2(%arg0: i32) -> (i32, i32) {
    %c0_i32 = arith.constant 0 : i32
    %c0_i32_0 = arith.constant 0 : i32
    %c0_i32_1 = arith.constant 0 : i32
    return %c0_i32, %c0_i32_0 : i32, i32
  }
  func.func @transform_3(%arg0: i32) -> (i32, i32) {
    %c0_i32 = arith.constant 0 : i32
    %c0_i32_0 = arith.constant 0 : i32
    return %arg0, %c0_i32 : i32, i32
  }
}

</mosaic_0001>

<llo_original>
// kernel: tpu_custom_call.1
$region0: #{tpu_custom_call.1}
  #allocation0 [shape = 'u32[]', space=smem, size = 0x4, offset = 0x4, fixed_abs, tag = 'smem constant byte address 0x4 - core index']
  #allocation1 [shape = 'u32[72,128]{1,0:T(1,128)}', space=vmem, size = 0x9000, scoped, tag = 'internal scratch']
  %s0 = inlined_call_operand.vmem [shape: f32[300,32], index: 0, kind: input, shape index: {}]
  %s1 = inlined_call_operand.vmem [shape: f32[32,128], index: 1, kind: input, shape index: {}]
  %s2 = inlined_call_operand.vmem [shape: f32[1,128], index: 2, kind: input, shape index: {}]
  %s3 = inlined_call_operand.hbm [shape: f32[300,128], index: 3, kind: output, shape index: {}]
  %s4 = sld [smem:[#allocation0]]
  $region45: #{tpu_custom_call.1} parent=0
    _
  %s6 = ssub.s32 1, %s4
  %s7 = scalar_select 0, %s6, %s4
  $region1: #{tpu_custom_call.1} parent=0
    #allocation2 [shape = 'u8[131072]{0}', space=vmem, size = 0x20000, scoped, tag = 'output window, operand 0']
    #allocation3 [shape = 's32[2]{0}', space=sflag, size = 0x8, scoped, tag = 'scoped memory for tpu_custom_call.1']
    %8 = vsyncpa [#allocation3], 0
    %s9 = scalar_lea.sflag [#allocation3], 1
    %10 = vsyncpa %s9, 0
    loop: start=0, step=1, limit=5
    $region2: #{tpu_custom_call.1} parent=1 // loop_pre_header
      _
    $region3: #{tpu_custom_call.1} parent=1 // loop_header
      %s12 = sphi 0, %s16
      %p13 = scmp.ge.s32.totalorder %s12, 5
      %s22 = sphi 0, %s24
      %s25 = sphi 0, %s22
      %s26 = sphi 0, %s25
      %s42 = sphi 0, %s26
      %s46 = sphi 0, %s46
      %s48 = sphi 0, %s46
      %s49 = sphi 0, %s48
      %s63 = sphi 0, %s49
      %s67 = sphi 0, %s67
      %s69 = sphi 0, %s67
      %s70 = sphi 0, %s69
      %s84 = sphi 0, %s70
      %s90 = sphi 0, %s92
      %s93 = sphi 0, %s90
      %s94 = sphi 0, %s93
      %s110 = sphi 0, %s94
    $region4: #{tpu_custom_call.1} parent=1 // loop_header_branch
      %15 = sbr.rel (%p13) target = $region8
    $region5: #{tpu_custom_call.1} parent=1 // loop_body
      %s17 = ssub.s32 %s12, 1
      %s18 = ssub.s32 %s12, 2
      %s19 = sadd.s32 %s12, 1
      %s20 = ssub.s32 %s12, %s19
      %p21 = scmp.eq.s32.totalorder %s20, 0
      %s23 = sadd.s32 %s22, 1
      %s24 = scalar_select %p21, %s22, %s23
      %p27 = pneg %p21
      %p28 = scmp.eq.s32.totalorder %s12, 2
      %p29 = por %p27, %p28
      %p30 = scmp.ne.s32.totalorder %s22, %s25
      %p31 = scmp.eq.s32.totalorder %s12, 0
      %p32 = por %p30, %p31
      %p33 = scmp.ne.s32.totalorder %s22, %s25
      %p34 = scmp.eq.s32.totalorder %s17, 2
      %p35 = por %p33, %p34
      %p36 = scmp.ne.s32.totalorder %s25, %s26
      %p37 = scmp.eq.s32.totalorder %s17, 0
      %p38 = por %p36, %p37
      %p39 = scmp.ne.s32.totalorder %s25, %s26
      %p40 = scmp.eq.s32.totalorder %s18, 2
      %p41 = por %p39, %p40
      %p43 = scmp.ne.s32.totalorder %s26, %s42
      %p44 = scmp.eq.s32.totalorder %s18, 0
      %p45 = por %p43, %p44
      %s47 = sadd.s32 %s46, 1
      %p50 = scmp.eq.s32.totalorder %s12, 2
      %p51 = scmp.ne.s32.totalorder %s46, %s48
      %p52 = scmp.eq.s32.totalorder %s12, 0
      %p53 = por %p51, %p52
      %p54 = scmp.ne.s32.totalorder %s46, %s48
      %p55 = scmp.eq.s32.totalorder %s17, 2
      %p56 = por %p54, %p55
      %p57 = scmp.ne.s32.totalorder %s48, %s49
      %p58 = scmp.eq.s32.totalorder %s17, 0
      %p59 = por %p57, %p58
      %p60 = scmp.ne.s32.totalorder %s48, %s49
      %p61 = scmp.eq.s32.totalorder %s18, 2
      %p62 = por %p60, %p61
      %p64 = scmp.ne.s32.totalorder %s49, %s63
      %p65 = scmp.eq.s32.totalorder %s18, 0
      %p66 = por %p64, %p65
      %s68 = sadd.s32 %s67, 1
      %p71 = scmp.eq.s32.totalorder %s12, 2
      %p72 = scmp.ne.s32.totalorder %s67, %s69
      %p73 = scmp.eq.s32.totalorder %s12, 0
      %p74 = por %p72, %p73
      %p75 = scmp.ne.s32.totalorder %s67, %s69
      %p76 = scmp.eq.s32.totalorder %s17, 2
      %p77 = por %p75, %p76
      %p78 = scmp.ne.s32.totalorder %s69, %s70
      %p79 = scmp.eq.s32.totalorder %s17, 0
      %p80 = por %p78, %p79
      %p81 = scmp.ne.s32.totalorder %s69, %s70
      %p82 = scmp.eq.s32.totalorder %s18, 2
      %p83 = por %p81, %p82
      %p85 = scmp.ne.s32.totalorder %s70, %s84
      %p86 = scmp.eq.s32.totalorder %s18, 0
      %p87 = por %p85, %p86
      %s88 = ssub.s32 %s12, %s19
      %p89 = scmp.eq.s32.totalorder %s88, 0
      %s91 = sadd.s32 %s90, 1
      %s92 = scalar_select %p89, %s90, %s91
      %p95 = pneg %p89
      %p96 = scmp.eq.s32.totalorder %s12, 2
      %p97 = por %p95, %p96
      %p98 = scmp.ne.s32.totalorder %s90, %s93
      %p99 = scmp.eq.s32.totalorder %s12, 0
      %p100 = por %p98, %p99
      %p101 = scmp.ne.s32.totalorder %s90, %s93
      %p102 = scmp.eq.s32.totalorder %s17, 2
      %p103 = por %p101, %p102
      %p104 = scmp.ne.s32.totalorder %s93, %s94
      %p105 = scmp.eq.s32.totalorder %s17, 0
      %p106 = por %p104, %p105
      %p107 = scmp.ne.s32.totalorder %s93, %s94
      %p108 = scmp.eq.s32.totalorder %s18, 2
      %p109 = por %p107, %p108
      %p111 = scmp.ne.s32.totalorder %s94, %s110
      %p112 = scmp.eq.s32.totalorder %s18, 0
      %p113 = por %p111, %p112
      %p114 = scmp.le.s32.totalorder 1, %s12
      %p115 = scmp.lt.s32.totalorder %s12, 4
      %p116 = pnand %p114, %p115
      %p117 = pneg %p116
      // Predicated region
      $region9: #{tpu_custom_call.1} parent=5 // pred_check
        _
      $region10: #{tpu_custom_call.1} parent=5 // pred_check_branch
        %119 = sbr.rel (%p116) target = $region12
      $region11: #{tpu_custom_call.1} parent=5 // pred_region
        %s120 = ssub.s32 %s12, 1
        // Predicated region
        $region13: #{tpu_custom_call.1} parent=11 // pred_check
          %p121 = pneg %p59
        $region14: #{tpu_custom_call.1} parent=11 // pred_check_branch
          %123 = sbr.rel (%p121) target = $region16
        $region15: #{tpu_custom_call.1} parent=11 // pred_region
          _
        $region16: #{tpu_custom_call.1} parent=11 // pred_fallthru
          _
        // Predicated region
        $region17: #{tpu_custom_call.1} parent=11 // pred_check
          %p124 = pneg %p80
        $region18: #{tpu_custom_call.1} parent=11 // pred_check_branch
          %126 = sbr.rel (%p124) target = $region20
        $region19: #{tpu_custom_call.1} parent=11 // pred_region
          _
        $region20: #{tpu_custom_call.1} parent=11 // pred_fallthru
          _
      $region12: #{tpu_custom_call.1} parent=5 // pred_fallthru
        _
      %p127 = scmp.lt.s32.totalorder %s12, 3
      // Predicated region
      $region21: #{tpu_custom_call.1} parent=5 // pred_check
        %p128 = pneg %p127
      $region22: #{tpu_custom_call.1} parent=5 // pred_check_branch
        %130 = sbr.rel (%p128) target = $region24
      $region23: #{tpu_custom_call.1} parent=5 // pred_region
        // Predicated region
        $region25: #{tpu_custom_call.1} parent=23 // pred_check
          %p131 = pneg %p32
        $region26: #{tpu_custom_call.1} parent=23 // pred_check_branch
          %133 = sbr.rel (%p131) target = $region28
        $region27: #{tpu_custom_call.1} parent=23 // pred_region
          %s134 = smul.u32 16, %s12
          %s135 = ssub.s32 38, %s134
          %p136 = scmp.lt.s32.totalorder %s135, 16
          %s137 = scalar_select %p136, %s135, 16
          %s138 = smul.u32 8, %s137
          %p139 = scmp.lt.s32.totalorder %s134, 37
          %s140 = scalar_select %p139, %s134, 37
          %s141 = smul.addr %s140, 8
          %s142 = scalar_lea.vmem %s0, %s141
          %s143 = smul.u32 16, %s12
          %s144 = ssub.s32 38, %s143
          %p145 = scmp.lt.s32.totalorder %s144, 16
          %s146 = scalar_select %p145, %s144, 16
          %s147 = smul.u32 8, %s146
        $region28: #{tpu_custom_call.1} parent=23 // pred_fallthru
          _
      $region24: #{tpu_custom_call.1} parent=5 // pred_fallthru
        _
      %p148 = scmp.le.s32.totalorder 1, %s12
      %p149 = scmp.lt.s32.totalorder %s12, 4
      %p150 = pnand %p148, %p149
      %p151 = pneg %p150
      // Predicated region
      $region29: #{tpu_custom_call.1} parent=5 // pred_check
        _
      $region30: #{tpu_custom_call.1} parent=5 // pred_check_branch
        %153 = sbr.rel (%p150) target = $region32
      $region31: #{tpu_custom_call.1} parent=5 // pred_region
        %s154 = ssub.s32 %s12, 1
        %s155 = smul.u32 16, %s17
        %s156 = ssub.s32 38, %s155
        %p157 = scmp.lt.s32.totalorder %s156, 16
        %s158 = scalar_select %p157, %s156, 16
        %s159 = smul.u32 8, %s158
        %p160 = scmp.lt.s32.totalorder %s155, 37
        %s161 = scalar_select %p160, %s155, 37
        %s162 = smul.addr %s161, 8
        %s163 = scalar_lea.vmem %s0, %s162
        %p164 = pneg %p38
        %p165 = pneg %p35
        %p166 = pneg %p59
        %p167 = pneg %p56
        %p168 = pneg %p80
        %p169 = pneg %p77
        %p170 = pneg %p106
        %p171 = pneg %p103
        %s172 = sand.u32 %s93, 1
        %s173 = scalar_lea.sflag [#allocation3], %s172
        %s174 = sand.u32 %s93, 1
        %s175 = smul.addr %s174, 128
        %s176 = scalar_lea.vmem [#allocation2], %s175
        %s177 = smul.u32 16, %s17
        %s178 = ssub.s32 38, %s177
        %p179 = scmp.lt.s32.totalorder %s178, 16
        %s180 = scalar_select %p179, %s178, 16
        %s181 = smul.u32 8, %s180
        %p182 = scmp.lt.s32.totalorder %s177, 37
        %s183 = scalar_select %p182, %s177, 37
        %s184 = smul.addr %s183, 8
        %s185 = scalar_lea.vmem %s0, %s184
        %s186 = smul.u32 16, %s17
        %s187 = ssub.s32 38, %s186
        %p188 = scmp.lt.s32.totalorder %s187, 16
        %s189 = scalar_select %p188, %s187, 16
        %s190 = smul.u32 8, %s189
        %s191 = smul.u32 16, %s17
        %s192 = ssub.s32 38, %s191
        %p193 = scmp.lt.s32.totalorder %s192, 16
        %s194 = scalar_select %p193, %s192, 16
        %s195 = smul.u32 8, %s194
        %v196 = vld [vmem:[%s185] sm:$0xff]
        %v197 = vld [vmem:[%s185 + $0x8] sm:$0xff]
        %v198 = vld [vmem:[%s185 + $0x10] sm:$0xff]
        %v199 = vld [vmem:[%s185 + $0x18] sm:$0xff]
        %v200 = vld [vmem:[%s185 + $0x20] sm:$0xff]
        %v201 = vld [vmem:[%s185 + $0x28] sm:$0xff]
        %v202 = vld [vmem:[%s185 + $0x30] sm:$0xff]
        %v203 = vld [vmem:[%s185 + $0x38] sm:$0xff]
        %v204 = vld [vmem:[%s185 + $0x40] sm:$0xff]
        %v205 = vld [vmem:[%s185 + $0x48] sm:$0xff]
        %v206 = vld [vmem:[%s185 + $0x50] sm:$0xff]
        %v207 = vld [vmem:[%s185 + $0x58] sm:$0xff]
        %v208 = vld [vmem:[%s185 + $0x60] sm:$0xff]
        %v209 = vld [vmem:[%s185 + $0x68] sm:$0xff]
        %v210 = vld [vmem:[%s185 + $0x70] sm:$0xff]
        %v211 = vld [vmem:[%s185 + $0x78] sm:$0xff]
        %v212 = vld [vmem:[%s1] sm:$0xff]
        %v213 = vld [vmem:[%s1 + $0x8] sm:$0xff]
        %v214 = vld [vmem:[%s1 + $0x10] sm:$0xff]
        %v215 = vld [vmem:[%s1 + $0x18] sm:$0xff]
        %v216 = vld [vmem:[%s2] sm:$0x1]
        %v218 = vperm.slane %v216, 0
        %vm220 = vcmask 261120
        %v222 = vsel %vm220, %v196, 0
        %v225 = vsel %vm220, %v197, 0
        %v228 = vsel %vm220, %v198, 0
        %v231 = vsel %vm220, %v199, 0
        %v234 = vsel %vm220, %v200, 0
        %v237 = vsel %vm220, %v201, 0
        %v240 = vsel %vm220, %v202, 0
        %v243 = vsel %vm220, %v203, 0
        %v246 = vsel %vm220, %v204, 0
        %v249 = vsel %vm220, %v205, 0
        %v252 = vsel %vm220, %v206, 0
        %v255 = vsel %vm220, %v207, 0
        %v258 = vsel %vm220, %v208, 0
        %v261 = vsel %vm220, %v209, 0
        %v264 = vsel %vm220, %v210, 0
        %v267 = vsel %vm220, %v211, 0
        %269 = vmatpush.msra.mxu0 0.0
        %270 = vmatpush.msra.mxu0 0.0
        %271 = vmatpush.msra.mxu0 0.0
        %272 = vmatpush.msra.mxu0 0.0
        %273 = vmatpush.msra.mxu0 0.0
        %274 = vmatpush.msra.mxu0 0.0
        %275 = vmatpush.msra.mxu0 0.0
        %276 = vmatpush.msra.mxu0 0.0
        %277 = vmatpush.msra.mxu0 0.0
        %278 = vmatpush.msra.mxu0 0.0
        %279 = vmatpush.msra.mxu0 0.0
        %280 = vmatpush.msra.mxu0 0.0
        %281 = vmatpush.msra.mxu0 %v215
        %282 = vmatpush.msra.mxu0 %v214
        %283 = vmatpush.msra.mxu0 %v213
        %284 = vmatpush.msra.mxu0 %v212
        %285 = vmatmul.f32.gmra.mxu0 %v222
        %v286 = vpop.f32.mrf.mxu0
        %v287 = vadd.f32 %v218, %v286
        %288 = vmatmul.f32.gmra.mxu0 %v225
        %v289 = vpop.f32.mrf.mxu0
        %v290 = vadd.f32 %v218, %v289
        %291 = vmatmul.f32.gmra.mxu0 %v228
        %v292 = vpop.f32.mrf.mxu0
        %v293 = vadd.f32 %v218, %v292
        %294 = vmatmul.f32.gmra.mxu0 %v231
        %v295 = vpop.f32.mrf.mxu0
        %v296 = vadd.f32 %v218, %v295
        %297 = vmatmul.f32.gmra.mxu0 %v234
        %v298 = vpop.f32.mrf.mxu0
        %v299 = vadd.f32 %v218, %v298
        %300 = vmatmul.f32.gmra.mxu0 %v237
        %v301 = vpop.f32.mrf.mxu0
        %v302 = vadd.f32 %v218, %v301
        %303 = vmatmul.f32.gmra.mxu0 %v240
        %v304 = vpop.f32.mrf.mxu0
        %v305 = vadd.f32 %v218, %v304
        %306 = vmatmul.f32.gmra.mxu0 %v243
        %v307 = vpop.f32.mrf.mxu0
        %v308 = vadd.f32 %v218, %v307
        %309 = vmatmul.f32.gmra.mxu0 %v246
        %v310 = vpop.f32.mrf.mxu0
        %v311 = vadd.f32 %v218, %v310
        %312 = vmatmul.f32.gmra.mxu0 %v249
        %v313 = vpop.f32.mrf.mxu0
        %v314 = vadd.f32 %v218, %v313
        %315 = vmatmul.f32.gmra.mxu0 %v252
        %v316 = vpop.f32.mrf.mxu0
        %v317 = vadd.f32 %v218, %v316
        %318 = vmatmul.f32.gmra.mxu0 %v255
        %v319 = vpop.f32.mrf.mxu0
        %v320 = vadd.f32 %v218, %v319
        %321 = vmatmul.f32.gmra.mxu0 %v258
        %v322 = vpop.f32.mrf.mxu0
        %v323 = vadd.f32 %v218, %v322
        %324 = vmatmul.f32.gmra.mxu0 %v261
        %v325 = vpop.f32.mrf.mxu0
        %v326 = vadd.f32 %v218, %v325
        %327 = vmatmul.f32.gmra.mxu0 %v264
        %v328 = vpop.f32.mrf.mxu0
        %v329 = vadd.f32 %v218, %v328
        %330 = vmatmul.f32.gmra.mxu0 %v267
        %v331 = vpop.f32.mrf.mxu0
        %v332 = vadd.f32 %v218, %v331
        %333 = vdwg.mxu0
        %v334 = vmax.f32 %v287, 0.0
        %v335 = vmax.f32 %v290, 0.0
        %v336 = vmax.f32 %v293, 0.0
        %v337 = vmax.f32 %v296, 0.0
        %v338 = vmax.f32 %v299, 0.0
        %v339 = vmax.f32 %v302, 0.0
        %v340 = vmax.f32 %v305, 0.0
        %v341 = vmax.f32 %v308, 0.0
        %v342 = vmax.f32 %v311, 0.0
        %v343 = vmax.f32 %v314, 0.0
        %v344 = vmax.f32 %v317, 0.0
        %v345 = vmax.f32 %v320, 0.0
        %v346 = vmax.f32 %v323, 0.0
        %v347 = vmax.f32 %v326, 0.0
        %v348 = vmax.f32 %v329, 0.0
        %v349 = vmax.f32 %v332, 0.0
        %350 = vst [vmem:[%s176] sm:$0xff] %v334
        %351 = vst [vmem:[%s176 + $0x8] sm:$0xff] %v335
        %352 = vst [vmem:[%s176 + $0x10] sm:$0xff] %v336
        %353 = vst [vmem:[%s176 + $0x18] sm:$0xff] %v337
        %354 = vst [vmem:[%s176 + $0x20] sm:$0xff] %v338
        %355 = vst [vmem:[%s176 + $0x28] sm:$0xff] %v339
        %356 = vst [vmem:[%s176 + $0x30] sm:$0xff] %v340
        %357 = vst [vmem:[%s176 + $0x38] sm:$0xff] %v341
        %358 = vst [vmem:[%s176 + $0x40] sm:$0xff] %v342
        %359 = vst [vmem:[%s176 + $0x48] sm:$0xff] %v343
        %360 = vst [vmem:[%s176 + $0x50] sm:$0xff] %v344
        %361 = vst [vmem:[%s176 + $0x58] sm:$0xff] %v345
        %362 = vst [vmem:[%s176 + $0x60] sm:$0xff] %v346
        %363 = vst [vmem:[%s176 + $0x68] sm:$0xff] %v347
        %364 = vst [vmem:[%s176 + $0x70] sm:$0xff] %v348
        %365 = vst [vmem:[%s176 + $0x78] sm:$0xff] %v349
        %s366 = sand.u32 %s93, 1
        %s367 = scalar_lea.sflag [#allocation3], %s366
        %s368 = sand.u32 %s93, 1
        %s369 = smul.addr %s368, 128
        %s370 = scalar_lea.vmem [#allocation2], %s369
        // Predicated region
        $region33: #{tpu_custom_call.1} parent=31 // pred_check
          %p371 = pneg %p103
        $region34: #{tpu_custom_call.1} parent=31 // pred_check_branch
          %373 = sbr.rel (%p371) target = $region36
        $region35: #{tpu_custom_call.1} parent=31 // pred_region
          %s374 = smul.u32 16, %s17
          %s375 = ssub.s32 38, %s374
          %p376 = scmp.lt.s32.totalorder %s375, 16
          %s377 = scalar_select %p376, %s375, 16
          %s378 = smul.u32 8, %s377
          %s379 = ssub.s32 128, %s378
          %s380 = sshll.u32 %s379, 4
          %381 = vsyncadd %s367, %s380
          %p382 = scmp.ne.s32.totalorder 0, %s378
          %s383 = smul.addr %s374, 8
          %s384 = scalar_lea.hbm %s3, %s383
          %s385 = smul.u32 8, %s377
          %s386 = sshll.u32 %s370, 4
          %s387 = int_to_ptr.vmem [resolvable:$true] %s386
          %s388 = sshll.u32 %s384, 4
          %s389 = int_to_ptr.hbm [resolvable:$true] %s388
          %s390 = sshll.u32 %s385, 4
          %394 = dma.vmem_to_hbm [thread:$0]  (%p382), %s387, %s390, %s389, %s367, 128, 128, 8
        $region36: #{tpu_custom_call.1} parent=31 // pred_fallthru
          _
      $region32: #{tpu_custom_call.1} parent=5 // pred_fallthru
        _
      %p395 = scmp.le.s32.totalorder 2, %s12
      // Predicated region
      $region37: #{tpu_custom_call.1} parent=5 // pred_check
        %p396 = pneg %p395
      $region38: #{tpu_custom_call.1} parent=5 // pred_check_branch
        %398 = sbr.rel (%p396) target = $region40
      $region39: #{tpu_custom_call.1} parent=5 // pred_region
        %s399 = ssub.s32 %s12, 2
        // Predicated region
        $region41: #{tpu_custom_call.1} parent=39 // pred_check
          %p400 = pneg %p109
        $region42: #{tpu_custom_call.1} parent=39 // pred_check_branch
          %402 = sbr.rel (%p400) target = $region44
        $region43: #{tpu_custom_call.1} parent=39 // pred_region
          %s403 = sand.u32 %s94, 1
          %s404 = scalar_lea.sflag [#allocation3], %s403
          %s405 = sand.u32 %s94, 1
          %s406 = smul.addr %s405, 128
          %s407 = scalar_lea.vmem [#allocation2], %s406
          %409 = dma.done %s404, 2048
        $region44: #{tpu_custom_call.1} parent=39 // pred_fallthru
          _
      $region40: #{tpu_custom_call.1} parent=5 // pred_fallthru
        _
    $region6: #{tpu_custom_call.1} parent=1 // loop_footer
      %s16 = sadd.s32 1, %s12
    $region7: #{tpu_custom_call.1} parent=1 // loop_footer_branch
      %11 = sbr.rel target = $region3
    $region8: #{tpu_custom_call.1} parent=1 // loop_exit
      _
    %410 = vsyncpa [#allocation3], 1
    %s411 = scalar_lea.sflag [#allocation3], 1
    %412 = vsyncpa %s411, 1

</llo_original>
